<compile_context>
chip_gen: v6e
topology: v6e:2x2x1
jax: 0.10.0
libtpu: 0.0.40
codegen_flags: <defaults>
</compile_context>

<pallas_src>
import functools

import jax
import jax.numpy as jnp
from jax.experimental import pallas as pl
from jax.experimental.pallas import tpu as pltpu


def _roberta_ada_output_kernel(
    x_ref,        # (TM, I)  dense input tile
    inp_ref,      # (TM, H)  residual input_tensor tile
    wd_ref,       # (I, H)   dense weight, pre-transposed
    bd_ref,       # (1, H)   dense bias
    w1_ref,       # (H, A)   adapter_proj_1 weight, pre-transposed
    w2_ref,       # (A, H)   adapter_proj_2 weight, pre-transposed
    g_ref,        # (1, H)   LayerNorm gamma (f32)
    b_ref,        # (1, H)   LayerNorm beta  (f32)
    o_ref,        # (TM, H)  output tile
    *,
    eps: float,
    inv_h: float,
):
    x = x_ref[...]

    # dense: Linear(intermediate -> hidden) with bias, f32 accumulation on MXU
    h = jnp.dot(x, wd_ref[...], preferred_element_type=jnp.float32)
    h = h + bd_ref[...].astype(jnp.float32)

    # adapter (LiST): (h @ W1^T) @ W2^T + h   (no activation, no bias)
    a = jnp.dot(h.astype(w1_ref.dtype), w1_ref[...],
                preferred_element_type=jnp.float32)
    a = jnp.dot(a.astype(w2_ref.dtype), w2_ref[...],
                preferred_element_type=jnp.float32)
    h = a + h

    # dropout: identity in eval / inference
    # LayerNorm(h + input_tensor) over the hidden dim, all in f32
    z = h + inp_ref[...].astype(jnp.float32)
    mean = jnp.sum(z, axis=-1, keepdims=True) * inv_h
    centered = z - mean
    var = jnp.sum(centered * centered, axis=-1, keepdims=True) * inv_h
    norm = centered * jax.lax.rsqrt(var + eps)
    y = norm * g_ref[...] + b_ref[...]

    o_ref[...] = y.astype(o_ref.dtype)


def prepare_params(params, *, matmul_dtype=None):
    """One-time parameter prep: transpose weights (avoid per-call transposes),
    optionally cast matmul operand weights to bf16, keep LN params in f32."""
    wd_t = params["dense_w"].T          # (I, H)
    w1_t = params["w1"].T               # (H, A)
    w2_t = params["w2"].T               # (A, H)
    if matmul_dtype is not None:
        wd_t = wd_t.astype(matmul_dtype)
        w1_t = w1_t.astype(matmul_dtype)
        w2_t = w2_t.astype(matmul_dtype)
    H = wd_t.shape[1]
    return {
        "wd_t": wd_t,
        "bd": params["dense_b"].reshape(1, H).astype(jnp.float32),
        "w1_t": w1_t,
        "w2_t": w2_t,
        "ln_g": params["ln_g"].reshape(1, H).astype(jnp.float32),
        "ln_b": params["ln_b"].reshape(1, H).astype(jnp.float32),
    }


def roberta_ada_output(hidden_states, input_tensor, prepared, *,
                       eps=1e-5, block_m=256, matmul_dtype=None):
    """hidden_states: (B, S, I), input_tensor: (B, S, H) -> (B, S, H)."""
    B, S, I = hidden_states.shape
    H = input_tensor.shape[-1]
    A = prepared["w1_t"].shape[1]

    M = B * S
    x2d = hidden_states.reshape(M, I)
    inp2d = input_tensor.reshape(M, H)
    if matmul_dtype is not None:
        x2d = x2d.astype(matmul_dtype)

    # Token-dim tile: multiple of 8 sublanes (or full M if M is tiny).
    tm = min(block_m, M)
    if tm % 8 != 0:
        tm = max(8, (tm // 8) * 8) if M >= 8 else M
    n_blocks = pl.cdiv(M, tm)
    m_pad = n_blocks * tm
    if m_pad != M:
        pad = m_pad - M
        x2d = jnp.pad(x2d, ((0, pad), (0, 0)))
        inp2d = jnp.pad(inp2d, ((0, pad), (0, 0)))

    kernel = functools.partial(
        _roberta_ada_output_kernel, eps=float(eps), inv_h=1.0 / float(H))

    out2d = pl.pallas_call(
        kernel,
        out_shape=jax.ShapeDtypeStruct((m_pad, H), input_tensor.dtype),
        grid_spec=pltpu.PrefetchScalarGridSpec(
            num_scalar_prefetch=0,
            grid=(n_blocks,),
            in_specs=[
                pl.BlockSpec((tm, I), lambda i: (i, 0)),   # x (pipelined)
                pl.BlockSpec((tm, H), lambda i: (i, 0)),   # residual (pipelined)
                pl.BlockSpec((I, H), lambda i: (0, 0)),    # dense W^T (resident)
                pl.BlockSpec((1, H), lambda i: (0, 0)),    # dense bias
                pl.BlockSpec((H, A), lambda i: (0, 0)),    # adapter W1^T
                pl.BlockSpec((A, H), lambda i: (0, 0)),    # adapter W2^T
                pl.BlockSpec((1, H), lambda i: (0, 0)),    # LN gamma
                pl.BlockSpec((1, H), lambda i: (0, 0)),    # LN beta
            ],
            out_specs=pl.BlockSpec((tm, H), lambda i: (i, 0)),
        ),
        compiler_params=pltpu.CompilerParams(
            dimension_semantics=("parallel",),
            vmem_limit_bytes=48 * 1024 * 1024,
        ),
    )(x2d, inp2d, prepared["wd_t"], prepared["bd"], prepared["w1_t"],
      prepared["w2_t"], prepared["ln_g"], prepared["ln_b"])

    # TODO(synk): for very large intermediate sizes on v7x, add a K-reduction
    # grid axis over I with an f32 VMEM accumulator instead of keeping full Wd
    # resident; not needed at RoBERTa-base/large sizes.

    return out2d[:M].reshape(B, S, H)


def _reference(hidden_states, input_tensor, params, *, eps=1e-5):
    h = hidden_states @ params["dense_w"].T + params["dense_b"]
    a = (h @ params["w1"].T) @ params["w2"].T + h
    z = a + input_tensor
    mean = jnp.mean(z, axis=-1, keepdims=True)
    var = jnp.mean((z - mean) ** 2, axis=-1, keepdims=True)
    return (z - mean) * jax.lax.rsqrt(var + eps) * params["ln_g"] + params["ln_b"]


if __name__ == "__main__":
    # Config: intermediate_size=64, hidden_size=32, adapter_dim=16,
    # adapter_choice='LiST', layer_norm_eps=1e-5, dropout inactive (eval).
    B, S = 2, 8
    intermediate_size = 64
    hidden_size = 32
    adapter_dim = 16
    eps = 1e-5

    key = jax.random.PRNGKey(0)
    ks = jax.random.split(key, 8)

    params = {
        "dense_w": 0.02 * jax.random.normal(ks[0], (hidden_size, intermediate_size), jnp.float32),
        "dense_b": 0.02 * jax.random.normal(ks[1], (hidden_size,), jnp.float32),
        "w1": 0.02 * jax.random.normal(ks[2], (adapter_dim, hidden_size), jnp.float32),
        "w2": 0.02 * jax.random.normal(ks[3], (hidden_size, adapter_dim), jnp.float32),
        "ln_g": jnp.ones((hidden_size,), jnp.float32),
        "ln_b": jnp.zeros((hidden_size,), jnp.float32),
    }

    hidden_states = jax.random.normal(ks[4], (B, S, intermediate_size), jnp.float32)
    input_tensor = jax.random.normal(ks[5], (B, S, hidden_size), jnp.float32)

    # One-time weight prep (transposes happen here, not per forward call).
    # For production on v5e/v6e/v7x pass matmul_dtype=jnp.bfloat16 here and in
    # roberta_ada_output for ~2x MXU throughput; the f32 test below keeps exact
    # matmul operands so tolerance stays tight.
    prepared = prepare_params(params, matmul_dtype=None)

    out = roberta_ada_output(hidden_states, input_tensor, prepared,
                             eps=eps, block_m=256, matmul_dtype=None)
    out = jax.block_until_ready(out)

    ref = _reference(hidden_states, input_tensor, params, eps=eps)
    assert out.shape == (B, S, hidden_size)
    assert jnp.allclose(out, ref, atol=1e-4, rtol=1e-4), "mismatch vs reference"

    print("KERNEL_OK")
</pallas_src>

<mosaic_0001>
module attributes {stable_mosaic.version = 11 : i64} {
  func.func @_roberta_ada_output_kernel(%arg0: i32, %arg1: memref<16x64xf32, #tpu.memory_space<vmem>>, %arg2: memref<16x32xf32, #tpu.memory_space<vmem>>, %arg3: memref<64x32xf32, #tpu.memory_space<vmem>>, %arg4: memref<1x32xf32, #tpu.memory_space<vmem>>, %arg5: memref<32x16xf32, #tpu.memory_space<vmem>>, %arg6: memref<16x32xf32, #tpu.memory_space<vmem>>, %arg7: memref<1x32xf32, #tpu.memory_space<vmem>>, %arg8: memref<1x32xf32, #tpu.memory_space<vmem>>, %arg9: memref<16x32xf32, #tpu.memory_space<vmem>>) attributes {dimension_semantics = [#tpu.dimension_semantics<parallel>], iteration_bounds = array<i64: 1>, scalar_prefetch = 0 : i64, scratch_operands = 0 : i64, tpu.core_type = #tpu.core_type<tc>, window_params = [{transform_indices = @transform_0, window_bounds = array<i64: 16, 64>}, {transform_indices = @transform_1, window_bounds = array<i64: 16, 32>}, {pipeline_mode = #tpu.pipeline_mode<synchronous>, transform_indices = @transform_2, window_bounds = array<i64: 64, 32>}, {pipeline_mode = #tpu.pipeline_mode<synchronous>, transform_indices = @transform_3, window_bounds = array<i64: 1, 32>}, {pipeline_mode = #tpu.pipeline_mode<synchronous>, transform_indices = @transform_4, window_bounds = array<i64: 32, 16>}, {pipeline_mode = #tpu.pipeline_mode<synchronous>, transform_indices = @transform_5, window_bounds = array<i64: 16, 32>}, {pipeline_mode = #tpu.pipeline_mode<synchronous>, transform_indices = @transform_6, window_bounds = array<i64: 1, 32>}, {pipeline_mode = #tpu.pipeline_mode<synchronous>, transform_indices = @transform_7, window_bounds = array<i64: 1, 32>}, {transform_indices = @transform_8, window_bounds = array<i64: 16, 32>}]} {
    %c0 = arith.constant 0 : index
    %c0_0 = arith.constant 0 : index
    %0 = vector.load %arg1[%c0, %c0_0] : memref<16x64xf32, #tpu.memory_space<vmem>>, vector<16x64xf32>
    %c0_1 = arith.constant 0 : index
    %c0_2 = arith.constant 0 : index
    %1 = vector.load %arg3[%c0_1, %c0_2] : memref<64x32xf32, #tpu.memory_space<vmem>>, vector<64x32xf32>
    %cst = arith.constant dense<0.000000e+00> : vector<16x32xf32>
    %2 = tpu.matmul %0, %1, %cst {dimension_numbers = #tpu.dot_dimension_numbers<[1], [0], [0], [1], [0, 0, 1, 1], [], []>} : vector<16x64xf32>, vector<64x32xf32>, vector<16x32xf32> -> vector<16x32xf32>
    %c0_3 = arith.constant 0 : index
    %c0_4 = arith.constant 0 : index
    %3 = vector.load %arg4[%c0_3, %c0_4] : memref<1x32xf32, #tpu.memory_space<vmem>>, vector<1x32xf32>
    %4 = vector.broadcast %3 : vector<1x32xf32> to vector<16x32xf32>
    %5 = arith.addf %2, %4 : vector<16x32xf32>
    %c0_5 = arith.constant 0 : index
    %c0_6 = arith.constant 0 : index
    %6 = vector.load %arg5[%c0_5, %c0_6] : memref<32x16xf32, #tpu.memory_space<vmem>>, vector<32x16xf32>
    %cst_7 = arith.constant dense<0.000000e+00> : vector<16x16xf32>
    %7 = tpu.matmul %5, %6, %cst_7 {dimension_numbers = #tpu.dot_dimension_numbers<[1], [0], [0], [1], [0, 0, 1, 1], [], []>} : vector<16x32xf32>, vector<32x16xf32>, vector<16x16xf32> -> vector<16x16xf32>
    %c0_8 = arith.constant 0 : index
    %c0_9 = arith.constant 0 : index
    %8 = vector.load %arg6[%c0_8, %c0_9] : memref<16x32xf32, #tpu.memory_space<vmem>>, vector<16x32xf32>
    %cst_10 = arith.constant dense<0.000000e+00> : vector<16x32xf32>
    %9 = tpu.matmul %7, %8, %cst_10 {dimension_numbers = #tpu.dot_dimension_numbers<[1], [0], [0], [1], [0, 0, 1, 1], [], []>} : vector<16x16xf32>, vector<16x32xf32>, vector<16x32xf32> -> vector<16x32xf32>
    %10 = arith.addf %9, %5 : vector<16x32xf32>
    %c0_11 = arith.constant 0 : index
    %c0_12 = arith.constant 0 : index
    %11 = vector.load %arg2[%c0_11, %c0_12] : memref<16x32xf32, #tpu.memory_space<vmem>>, vector<16x32xf32>
    %12 = arith.addf %10, %11 : vector<16x32xf32>
    %cst_13 = arith.constant dense<0.000000e+00> : vector<16xf32>
    %13 = vector.multi_reduction <add>, %12, %cst_13 [1] : vector<16x32xf32> to vector<16xf32>
    %14 = vector.shape_cast %13 : vector<16xf32> to vector<16x1xf32>
    %cst_14 = arith.constant 3.125000e-02 : f32
    %15 = vector.broadcast %cst_14 : f32 to vector<16x1xf32>
    %16 = arith.mulf %14, %15 : vector<16x1xf32>
    %17 = vector.broadcast %16 : vector<16x1xf32> to vector<16x32xf32>
    %18 = arith.subf %12, %17 : vector<16x32xf32>
    %19 = arith.mulf %18, %18 : vector<16x32xf32>
    %cst_15 = arith.constant dense<0.000000e+00> : vector<16xf32>
    %20 = vector.multi_reduction <add>, %19, %cst_15 [1] : vector<16x32xf32> to vector<16xf32>
    %21 = vector.shape_cast %20 : vector<16xf32> to vector<16x1xf32>
    %cst_16 = arith.constant 3.125000e-02 : f32
    %22 = vector.broadcast %cst_16 : f32 to vector<16x1xf32>
    %23 = arith.mulf %21, %22 : vector<16x1xf32>
    %cst_17 = arith.constant 9.99999974E-6 : f32
    %24 = vector.broadcast %cst_17 : f32 to vector<16x1xf32>
    %25 = arith.addf %23, %24 : vector<16x1xf32>
    %26 = math.rsqrt %25 : vector<16x1xf32>
    %27 = vector.broadcast %26 : vector<16x1xf32> to vector<16x32xf32>
    %28 = arith.mulf %18, %27 : vector<16x32xf32>
    %c0_18 = arith.constant 0 : index
    %c0_19 = arith.constant 0 : index
    %29 = vector.load %arg7[%c0_18, %c0_19] : memref<1x32xf32, #tpu.memory_space<vmem>>, vector<1x32xf32>
    %30 = vector.broadcast %29 : vector<1x32xf32> to vector<16x32xf32>
    %31 = arith.mulf %28, %30 : vector<16x32xf32>
    %c0_20 = arith.constant 0 : index
    %c0_21 = arith.constant 0 : index
    %32 = vector.load %arg8[%c0_20, %c0_21] : memref<1x32xf32, #tpu.memory_space<vmem>>, vector<1x32xf32>
    %33 = vector.broadcast %32 : vector<1x32xf32> to vector<16x32xf32>
    %34 = arith.addf %31, %33 : vector<16x32xf32>
    %c0_22 = arith.constant 0 : index
    %c0_23 = arith.constant 0 : index
    %35 = vector.load %arg9[%c0_22, %c0_23] : memref<16x32xf32, #tpu.memory_space<vmem>>, vector<16x32xf32>
    tpu.vector_store %arg9[%c0_22, %c0_23], %34 {strides = array<i32>} : memref<16x32xf32, #tpu.memory_space<vmem>>, vector<16x32xf32>,
    return
  }
  func.func @transform_0(%arg0: i32) -> (i32, i32) {
    %c0_i32 = arith.constant 0 : i32
    %c0_i32_0 = arith.constant 0 : i32
    return %arg0, %c0_i32 : i32, i32
  }
  func.func @transform_1(%arg0: i32) -> (i32, i32) {
    %c0_i32 = arith.constant 0 : i32
    %c0_i32_0 = arith.constant 0 : i32
    return %arg0, %c0_i32 : i32, i32
  }
  func.func @transform_2(%arg0: i32) -> (i32, i32) {
    %c0_i32 = arith.constant 0 : i32
    %c0_i32_0 = arith.constant 0 : i32
    %c0_i32_1 = arith.constant 0 : i32
    return %c0_i32, %c0_i32_0 : i32, i32
  }
  func.func @transform_3(%arg0: i32) -> (i32, i32) {
    %c0_i32 = arith.constant 0 : i32
    %c0_i32_0 = arith.constant 0 : i32
    %c0_i32_1 = arith.constant 0 : i32
    return %c0_i32, %c0_i32_0 : i32, i32
  }
  func.func @transform_4(%arg0: i32) -> (i32, i32) {
    %c0_i32 = arith.constant 0 : i32
    %c0_i32_0 = arith.constant 0 : i32
    %c0_i32_1 = arith.constant 0 : i32
    return %c0_i32, %c0_i32_0 : i32, i32
  }
  func.func @transform_5(%arg0: i32) -> (i32, i32) {
    %c0_i32 = arith.constant 0 : i32
    %c0_i32_0 = arith.constant 0 : i32
    %c0_i32_1 = arith.constant 0 : i32
    return %c0_i32, %c0_i32_0 : i32, i32
  }
  func.func @transform_6(%arg0: i32) -> (i32, i32) {
    %c0_i32 = arith.constant 0 : i32
    %c0_i32_0 = arith.constant 0 : i32
    %c0_i32_1 = arith.constant 0 : i32
    return %c0_i32, %c0_i32_0 : i32, i32
  }
  func.func @transform_7(%arg0: i32) -> (i32, i32) {
    %c0_i32 = arith.constant 0 : i32
    %c0_i32_0 = arith.constant 0 : i32
    %c0_i32_1 = arith.constant 0 : i32
    return %c0_i32, %c0_i32_0 : i32, i32
  }
  func.func @transform_8(%arg0: i32) -> (i32, i32) {
    %c0_i32 = arith.constant 0 : i32
    %c0_i32_0 = arith.constant 0 : i32
    return %arg0, %c0_i32 : i32, i32
  }
}

</mosaic_0001>

<llo_original>
// kernel: tpu_custom_call.1
$region0: #{tpu_custom_call.1}
  #allocation0 [shape = 'u32[]', space=smem, size = 0x4, offset = 0x4, fixed_abs, tag = 'smem constant byte address 0x4 - core index']
  #allocation1 [shape = 'u32[144,128]{1,0:T(1,128)}', space=vmem, size = 0x12000, scoped, tag = 'internal scratch']
  %s0 = inlined_call_operand.vmem [shape: f32[16,64], index: 0, kind: input, shape index: {}]
  %s1 = inlined_call_operand.vmem [shape: f32[16,32], index: 1, kind: input, shape index: {}]
  %s2 = inlined_call_operand.vmem [shape: f32[64,32], index: 2, kind: input, shape index: {}]
  %s3 = inlined_call_operand.vmem [shape: f32[1,32], index: 3, kind: input, shape index: {}]
  %s4 = inlined_call_operand.vmem [shape: f32[32,16], index: 4, kind: input, shape index: {}]
  %s5 = inlined_call_operand.vmem [shape: f32[16,32], index: 5, kind: input, shape index: {}]
  %s6 = inlined_call_operand.vmem [shape: f32[1,32], index: 6, kind: input, shape index: {}]
  %s7 = inlined_call_operand.vmem [shape: f32[1,32], index: 7, kind: input, shape index: {}]
  %s8 = inlined_call_operand.hbm [shape: f32[16,32], index: 8, kind: output, shape index: {}]
  %s9 = sld [smem:[#allocation0]]
  $region42: #{tpu_custom_call.1} parent=0
    _
  %s11 = ssub.s32 1, %s9
  %s12 = scalar_select 0, %s11, %s9
  $region1: #{tpu_custom_call.1} parent=0
    #allocation2 [shape = 'u8[8192]{0}', space=vmem, size = 0x2000, scoped, tag = 'output window, operand 0, single buffered']
    #allocation3 [shape = 's32[1]{0}', space=sflag, size = 0x4, scoped, tag = 'scoped memory for tpu_custom_call.1']
    %13 = vsyncpa [#allocation3], 0
    // Predicated region
    $region2: #{tpu_custom_call.1} parent=1 // pred_check
      _
    $region3: #{tpu_custom_call.1} parent=1 // pred_check_branch
      %15 = sbr.rel (0) target = $region5
    $region4: #{tpu_custom_call.1} parent=1 // pred_region
      _
    $region5: #{tpu_custom_call.1} parent=1 // pred_fallthru
      _
    // Predicated region
    $region6: #{tpu_custom_call.1} parent=1 // pred_check
      _
    $region7: #{tpu_custom_call.1} parent=1 // pred_check_branch
      %17 = sbr.rel (0) target = $region9
    $region8: #{tpu_custom_call.1} parent=1 // pred_region
      _
    $region9: #{tpu_custom_call.1} parent=1 // pred_fallthru
      _
    // Predicated region
    $region10: #{tpu_custom_call.1} parent=1 // pred_check
      _
    $region11: #{tpu_custom_call.1} parent=1 // pred_check_branch
      %19 = sbr.rel (0) target = $region13
    $region12: #{tpu_custom_call.1} parent=1 // pred_region
      _
    $region13: #{tpu_custom_call.1} parent=1 // pred_fallthru
      _
    // Predicated region
    $region14: #{tpu_custom_call.1} parent=1 // pred_check
      _
    $region15: #{tpu_custom_call.1} parent=1 // pred_check_branch
      %21 = sbr.rel (0) target = $region17
    $region16: #{tpu_custom_call.1} parent=1 // pred_region
      _
    $region17: #{tpu_custom_call.1} parent=1 // pred_fallthru
      _
    // Predicated region
    $region18: #{tpu_custom_call.1} parent=1 // pred_check
      _
    $region19: #{tpu_custom_call.1} parent=1 // pred_check_branch
      %23 = sbr.rel (0) target = $region21
    $region20: #{tpu_custom_call.1} parent=1 // pred_region
      _
    $region21: #{tpu_custom_call.1} parent=1 // pred_fallthru
      _
    // Predicated region
    $region22: #{tpu_custom_call.1} parent=1 // pred_check
      _
    $region23: #{tpu_custom_call.1} parent=1 // pred_check_branch
      %25 = sbr.rel (0) target = $region25
    $region24: #{tpu_custom_call.1} parent=1 // pred_region
      _
    $region25: #{tpu_custom_call.1} parent=1 // pred_fallthru
      _
    // Predicated region
    $region26: #{tpu_custom_call.1} parent=1 // pred_check
      _
    $region27: #{tpu_custom_call.1} parent=1 // pred_check_branch
      %27 = sbr.rel (0) target = $region29
    $region28: #{tpu_custom_call.1} parent=1 // pred_region
      _
    $region29: #{tpu_custom_call.1} parent=1 // pred_fallthru
      _
    // Predicated region
    $region30: #{tpu_custom_call.1} parent=1 // pred_check
      _
    $region31: #{tpu_custom_call.1} parent=1 // pred_check_branch
      %29 = sbr.rel (0) target = $region33
    $region32: #{tpu_custom_call.1} parent=1 // pred_region
      _
    $region33: #{tpu_custom_call.1} parent=1 // pred_fallthru
      _
    %v30 = vld [vmem:[%s0] sm:$0xff]
    %v31 = vld [vmem:[%s0 + $0x8] sm:$0xff]
    %v32 = vld [vmem:[%s2] sm:$0xff]
    %v33 = vld [vmem:[%s2 + $0x8] sm:$0xff]
    %v34 = vld [vmem:[%s2 + $0x10] sm:$0xff]
    %v35 = vld [vmem:[%s2 + $0x18] sm:$0xff]
    %v36 = vld [vmem:[%s2 + $0x20] sm:$0xff]
    %v37 = vld [vmem:[%s2 + $0x28] sm:$0xff]
    %v38 = vld [vmem:[%s2 + $0x30] sm:$0xff]
    %v39 = vld [vmem:[%s2 + $0x38] sm:$0xff]
    %v40 = vld [vmem:[%s3] sm:$0x1]
    %v42 = vlaneseq
    %v43 = vshrl.u32 %v42, 7
    %v44 = vsub.s32 0, %v43
    %v45 = vrot.slane %v40, %v44
    %vm47 = vcmask 523264
    %v49 = vsel %vm47, %v30, 0
    %v52 = vsel %vm47, %v31, 0
    %54 = vmatprep.subr.mxu0 0.0
    %55 = vmatpush1.msra.mxu0 0.0
    %56 = vmatprep.subr.mxu0 0.0
    %57 = vmatpush1.msra.mxu0 0.0
    %58 = vmatprep.subr.mxu0 0.0
    %59 = vmatpush1.msra.mxu0 0.0
    %60 = vmatprep.subr.mxu0 0.0
    %61 = vmatpush1.msra.mxu0 0.0
    %62 = vmatprep.subr.mxu0 0.0
    %63 = vmatpush1.msra.mxu0 0.0
    %64 = vmatprep.subr.mxu0 0.0
    %65 = vmatpush1.msra.mxu0 0.0
    %66 = vmatprep.subr.mxu0 0.0
    %67 = vmatpush1.msra.mxu0 0.0
    %68 = vmatprep.subr.mxu0 0.0
    %69 = vmatpush1.msra.mxu0 0.0
    %70 = vmatprep.subr.mxu0 0.0
    %71 = vmatpush1.msra.mxu0 %v39
    %72 = vmatprep.subr.mxu0 0.0
    %73 = vmatpush1.msra.mxu0 %v38
    %74 = vmatprep.subr.mxu0 0.0
    %75 = vmatpush1.msra.mxu0 %v37
    %76 = vmatprep.subr.mxu0 0.0
    %77 = vmatpush1.msra.mxu0 %v36
    %78 = vmatprep.subr.mxu0 0.0
    %79 = vmatpush1.msra.mxu0 %v35
    %80 = vmatprep.subr.mxu0 0.0
    %81 = vmatpush1.msra.mxu0 %v34
    %82 = vmatprep.subr.mxu0 0.0
    %83 = vmatpush1.msra.mxu0 %v33
    %84 = vmatprep.subr.mxu0 0.0
    %85 = vmatpush1.msra.mxu0 %v32
    %86 = vmatprep.subr.mxu0 0.0
    %87 = vmatpush2.msra.mxu0 0.0
    %88 = vmatprep.subr.mxu0 0.0
    %89 = vmatpush2.msra.mxu0 0.0
    %90 = vmatprep.subr.mxu0 0.0
    %91 = vmatpush2.msra.mxu0 0.0
    %92 = vmatprep.subr.mxu0 0.0
    %93 = vmatpush2.msra.mxu0 0.0
    %94 = vmatprep.subr.mxu0 0.0
    %95 = vmatpush2.msra.mxu0 0.0
    %96 = vmatprep.subr.mxu0 0.0
    %97 = vmatpush2.msra.mxu0 0.0
    %98 = vmatprep.subr.mxu0 0.0
    %99 = vmatpush2.msra.mxu0 0.0
    %100 = vmatprep.subr.mxu0 0.0
    %101 = vmatpush2.msra.mxu0 0.0
    %102 = vmatprep.subr.mxu0 0.0
    %103 = vmatpush2.msra.mxu0 0.0
    %104 = vmatprep.subr.mxu0 0.0
    %105 = vmatpush2.msra.mxu0 0.0
    %106 = vmatprep.subr.mxu0 0.0
    %107 = vmatpush2.msra.mxu0 0.0
    %108 = vmatprep.subr.mxu0 0.0
    %109 = vmatpush2.msra.mxu0 0.0
    %110 = vmatprep.subr.mxu0 0.0
    %111 = vmatpush2.msra.mxu0 0.0
    %112 = vmatprep.subr.mxu0 0.0
    %113 = vmatpush2.msra.mxu0 0.0
    %114 = vmatprep.subr.mxu0 0.0
    %115 = vmatpush2.msra.mxu0 0.0
    %116 = vmatprep.subr.mxu0 0.0
    %117 = vmatpush2.msra.mxu0 0.0
    %118 = vmatprep.mubr.f32.mxu0 0.0
    %119 = vmatmul.mubr.f32.gmra.mxu0 %v49
    %v120 = vpop.f32.mrf.mxu0
    %v121 = vadd.f32 %v45, %v120
    %v122 = vpop.f32.mrf.mxu0
    %123 = vmatprep.mubr.f32.mxu0 0.0
    %124 = vmatmul.mubr.f32.gmra.mxu0 %v52
    %v125 = vpop.f32.mrf.mxu0
    %v126 = vadd.f32 %v45, %v125
    %v127 = vpop.f32.mrf.mxu0
    %128 = vdwg.mxu0
    %v129 = vld [vmem:[%s4] sm:$0xff]
    %v130 = vld [vmem:[%s4 + $0x8] sm:$0xff]
    %v131 = vld [vmem:[%s4 + $0x10] sm:$0xff]
    %v132 = vld [vmem:[%s4 + $0x18] sm:$0xff]
    %vm133 = vcmask 261120
    %v135 = vsel %vm133, %v121, 0
    %v138 = vsel %vm133, %v126, 0
    %140 = vmatprep.subr.mxu0 0.0
    %141 = vmatpush1.msra.mxu0 0.0
    %142 = vmatprep.subr.mxu0 0.0
    %143 = vmatpush1.msra.mxu0 0.0
    %144 = vmatprep.subr.mxu0 0.0
    %145 = vmatpush1.msra.mxu0 0.0
    %146 = vmatprep.subr.mxu0 0.0
    %147 = vmatpush1.msra.mxu0 0.0
    %148 = vmatprep.subr.mxu0 0.0
    %149 = vmatpush1.msra.mxu0 0.0
    %150 = vmatprep.subr.mxu0 0.0
    %151 = vmatpush1.msra.mxu0 0.0
    %152 = vmatprep.subr.mxu0 0.0
    %153 = vmatpush1.msra.mxu0 0.0
    %154 = vmatprep.subr.mxu0 0.0
    %155 = vmatpush1.msra.mxu0 0.0
    %156 = vmatprep.subr.mxu0 0.0
    %157 = vmatpush1.msra.mxu0 0.0
    %158 = vmatprep.subr.mxu0 0.0
    %159 = vmatpush1.msra.mxu0 0.0
    %160 = vmatprep.subr.mxu0 0.0
    %161 = vmatpush1.msra.mxu0 0.0
    %162 = vmatprep.subr.mxu0 0.0
    %163 = vmatpush1.msra.mxu0 0.0
    %164 = vmatprep.subr.mxu0 0.0
    %165 = vmatpush1.msra.mxu0 %v132
    %166 = vmatprep.subr.mxu0 0.0
    %167 = vmatpush1.msra.mxu0 %v131
    %168 = vmatprep.subr.mxu0 0.0
    %169 = vmatpush1.msra.mxu0 %v130
    %170 = vmatprep.subr.mxu0 0.0
    %171 = vmatpush1.msra.mxu0 %v129
    %172 = vmatprep.subr.mxu0 0.0
    %173 = vmatpush2.msra.mxu0 0.0
    %174 = vmatprep.subr.mxu0 0.0
    %175 = vmatpush2.msra.mxu0 0.0
    %176 = vmatprep.subr.mxu0 0.0
    %177 = vmatpush2.msra.mxu0 0.0
    %178 = vmatprep.subr.mxu0 0.0
    %179 = vmatpush2.msra.mxu0 0.0
    %180 = vmatprep.subr.mxu0 0.0
    %181 = vmatpush2.msra.mxu0 0.0
    %182 = vmatprep.subr.mxu0 0.0
    %183 = vmatpush2.msra.mxu0 0.0
    %184 = vmatprep.subr.mxu0 0.0
    %185 = vmatpush2.msra.mxu0 0.0
    %186 = vmatprep.subr.mxu0 0.0
    %187 = vmatpush2.msra.mxu0 0.0
    %188 = vmatprep.subr.mxu0 0.0
    %189 = vmatpush2.msra.mxu0 0.0
    %190 = vmatprep.subr.mxu0 0.0
    %191 = vmatpush2.msra.mxu0 0.0
    %192 = vmatprep.subr.mxu0 0.0
    %193 = vmatpush2.msra.mxu0 0.0
    %194 = vmatprep.subr.mxu0 0.0
    %195 = vmatpush2.msra.mxu0 0.0
    %196 = vmatprep.subr.mxu0 0.0
    %197 = vmatpush2.msra.mxu0 0.0
    %198 = vmatprep.subr.mxu0 0.0
    %199 = vmatpush2.msra.mxu0 0.0
    %200 = vmatprep.subr.mxu0 0.0
    %201 = vmatpush2.msra.mxu0 0.0
    %202 = vmatprep.subr.mxu0 0.0
    %203 = vmatpush2.msra.mxu0 0.0
    %204 = vmatprep.mubr.f32.mxu0 0.0
    %205 = vmatmul.mubr.f32.gmra.mxu0 %v135
    %v206 = vpop.f32.mrf.mxu0
    %v207 = vadd.f32 0.0, %v206
    %v208 = vpop.f32.mrf.mxu0
    %209 = vmatprep.mubr.f32.mxu0 0.0
    %210 = vmatmul.mubr.f32.gmra.mxu0 %v138
    %v211 = vpop.f32.mrf.mxu0
    %v212 = vadd.f32 0.0, %v211
    %v213 = vpop.f32.mrf.mxu0
    %214 = vdwg.mxu0
    %v215 = vld [vmem:[%s5] sm:$0xff]
    %v216 = vld [vmem:[%s5 + $0x8] sm:$0xff]
    %vm217 = vcmask 130048
    %v219 = vsel %vm217, %v207, 0
    %v222 = vsel %vm217, %v212, 0
    %224 = vmatprep.subr.mxu0 0.0
    %225 = vmatpush1.msra.mxu0 0.0
    %226 = vmatprep.subr.mxu0 0.0
    %227 = vmatpush1.msra.mxu0 0.0
    %228 = vmatprep.subr.mxu0 0.0
    %229 = vmatpush1.msra.mxu0 0.0
    %230 = vmatprep.subr.mxu0 0.0
    %231 = vmatpush1.msra.mxu0 0.0
    %232 = vmatprep.subr.mxu0 0.0
    %233 = vmatpush1.msra.mxu0 0.0
    %234 = vmatprep.subr.mxu0 0.0
    %235 = vmatpush1.msra.mxu0 0.0
    %236 = vmatprep.subr.mxu0 0.0
    %237 = vmatpush1.msra.mxu0 0.0
    %238 = vmatprep.subr.mxu0 0.0
    %239 = vmatpush1.msra.mxu0 0.0
    %240 = vmatprep.subr.mxu0 0.0
    %241 = vmatpush1.msra.mxu0 0.0
    %242 = vmatprep.subr.mxu0 0.0
    %243 = vmatpush1.msra.mxu0 0.0
    %244 = vmatprep.subr.mxu0 0.0
    %245 = vmatpush1.msra.mxu0 0.0
    %246 = vmatprep.subr.mxu0 0.0
    %247 = vmatpush1.msra.mxu0 0.0
    %248 = vmatprep.subr.mxu0 0.0
    %249 = vmatpush1.msra.mxu0 0.0
    %250 = vmatprep.subr.mxu0 0.0
    %251 = vmatpush1.msra.mxu0 0.0
    %252 = vmatprep.subr.mxu0 0.0
    %253 = vmatpush1.msra.mxu0 %v216
    %254 = vmatprep.subr.mxu0 0.0
    %255 = vmatpush1.msra.mxu0 %v215
    %256 = vmatprep.subr.mxu0 0.0
    %257 = vmatpush2.msra.mxu0 0.0
    %258 = vmatprep.subr.mxu0 0.0
    %259 = vmatpush2.msra.mxu0 0.0
    %260 = vmatprep.subr.mxu0 0.0
    %261 = vmatpush2.msra.mxu0 0.0
    %262 = vmatprep.subr.mxu0 0.0
    %263 = vmatpush2.msra.mxu0 0.0
    %264 = vmatprep.subr.mxu0 0.0
    %265 = vmatpush2.msra.mxu0 0.0
    %266 = vmatprep.subr.mxu0 0.0
    %267 = vmatpush2.msra.mxu0 0.0
    %268 = vmatprep.subr.mxu0 0.0
    %269 = vmatpush2.msra.mxu0 0.0
    %270 = vmatprep.subr.mxu0 0.0
    %271 = vmatpush2.msra.mxu0 0.0
    %272 = vmatprep.subr.mxu0 0.0
    %273 = vmatpush2.msra.mxu0 0.0
    %274 = vmatprep.subr.mxu0 0.0
    %275 = vmatpush2.msra.mxu0 0.0
    %276 = vmatprep.subr.mxu0 0.0
    %277 = vmatpush2.msra.mxu0 0.0
    %278 = vmatprep.subr.mxu0 0.0
    %279 = vmatpush2.msra.mxu0 0.0
    %280 = vmatprep.subr.mxu0 0.0
    %281 = vmatpush2.msra.mxu0 0.0
    %282 = vmatprep.subr.mxu0 0.0
    %283 = vmatpush2.msra.mxu0 0.0
    %284 = vmatprep.subr.mxu0 0.0
    %285 = vmatpush2.msra.mxu0 0.0
    %286 = vmatprep.subr.mxu0 0.0
    %287 = vmatpush2.msra.mxu0 0.0
    %288 = vmatprep.mubr.f32.mxu0 0.0
    %289 = vmatmul.mubr.f32.gmra.mxu0 %v219
    %v290 = vpop.f32.mrf.mxu0
    %v291 = vadd.f32 %v121, %v290
    %v292 = vpop.f32.mrf.mxu0
    %293 = vmatprep.mubr.f32.mxu0 0.0
    %294 = vmatmul.mubr.f32.gmra.mxu0 %v222
    %v295 = vpop.f32.mrf.mxu0
    %v296 = vadd.f32 %v126, %v295
    %v297 = vpop.f32.mrf.mxu0
    %298 = vdwg.mxu0
    %v299 = vld [vmem:[%s1] sm:$0xff]
    %v300 = vld [vmem:[%s1 + $0x8] sm:$0xff]
    %v301 = vadd.f32 %v291, %v299
    %v302 = vadd.f32 %v296, %v300
    %v303 = vsel %vm133, %v301, 0.0
    %304 = vadd.xlane.f32.xlu0 %v303
    %v305 = vpop.xlane.xlu0 %304
    %v306 = vsel %vm133, %v302, 0.0
    %307 = vadd.xlane.f32.xlu0 %v306
    %v308 = vpop.xlane.xlu0 %307
    %v309 = vmul.f32 %v305, 0.03125
    %v310 = vmul.f32 %v308, 0.03125
    %v311 = vsub.f32 %v301, %v309
    %v312 = vsub.f32 %v302, %v310
    %v313 = vmul.f32 %v311, %v311
    %v314 = vmul.f32 %v312, %v312
    %v315 = vsel %vm133, %v313, 0.0
    %316 = vadd.xlane.f32.xlu0 %v315
    %v317 = vpop.xlane.xlu0 %316
    %v318 = vsel %vm133, %v314, 0.0
    %319 = vadd.xlane.f32.xlu0 %v318
    %v320 = vpop.xlane.xlu0 %319
    %v321 = vmul.f32 %v317, 0.03125
    %v322 = vmul.f32 %v320, 0.03125
    %v323 = vadd.f32 %v321, 1e-05
    %v324 = vadd.f32 %v322, 1e-05
    %v325 = vrsqrt.pop %v323
    %v326 = vrsqrt.pop %v324
    %v327 = vmul.f32 %v311, %v325
    %v328 = vmul.f32 %v312, %v326
    %v329 = vld [vmem:[%s6] sm:$0x1]
    %v331 = vlaneseq
    %v332 = vshrl.u32 %v331, 7
    %v333 = vsub.s32 0, %v332
    %v334 = vrot.slane %v329, %v333
    %v336 = vmul.f32 %v327, %v334
    %v337 = vmul.f32 %v328, %v334
    %v338 = vld [vmem:[%s7] sm:$0x1]
    %v340 = vlaneseq
    %v341 = vshrl.u32 %v340, 7
    %v342 = vsub.s32 0, %v341
    %v343 = vrot.slane %v338, %v342
    %v345 = vadd.f32 %v336, %v343
    %v346 = vadd.f32 %v337, %v343
    %347 = vst.msk [vmem:[#allocation2] sm:$0xff] %vm133, %v345
    %348 = vst.msk [vmem:[#allocation2 + $0x8] sm:$0xff] %vm133, %v346
    // Predicated region
    $region34: #{tpu_custom_call.1} parent=1 // pred_check
      _
    $region35: #{tpu_custom_call.1} parent=1 // pred_check_branch
      %350 = sbr.rel (0) target = $region37
    $region36: #{tpu_custom_call.1} parent=1 // pred_region
      %s352 = ssub.s32 256, 256
      %353 = vsyncadd [#allocation3], %s352
      %s354 = sshll.u32 [#allocation2], 4
      %s355 = int_to_ptr.vmem [resolvable:$true] %s354
      %360 = dma.vmem_to_hbm [thread:$0]  %s355, 256, %s8, [#allocation3], 128, 128, 8
    $region37: #{tpu_custom_call.1} parent=1 // pred_fallthru
      _
    // Predicated region
    $region38: #{tpu_custom_call.1} parent=1 // pred_check
      _
    $region39: #{tpu_custom_call.1} parent=1 // pred_check_branch
      %362 = sbr.rel (0) target = $region41
    $region40: #{tpu_custom_call.1} parent=1 // pred_region
      %363 = dma.done [#allocation3], 256
    $region41: #{tpu_custom_call.1} parent=1 // pred_fallthru
      _
    %364 = vsyncpa [#allocation3], 1

</llo_original>
